<compile_context>
chip_gen: v7x
topology: tpu7x:2x2x1
jax: 0.10.0
libtpu: 0.0.40
codegen_flags: <defaults>
</compile_context>

<pallas_src>
import functools

import jax
import jax.numpy as jnp
import numpy as np
from jax.experimental import pallas as pl
from jax.experimental.pallas import tpu as pltpu

N_JOINTS = 21
N_COORDS = 3
N_FLAT = N_JOINTS * N_COORDS  # 63


def _make_deinterleave_matrix():
    """(63, 63) f32 permutation P with (t @ P)[:, c*21 + j] == t[:, 3*j + c]."""
    k = np.arange(N_FLAT)
    c, j = k % N_COORDS, k // N_COORDS
    P = np.zeros((N_FLAT, N_FLAT), np.float32)
    P[k, c * N_JOINTS + j] = 1.0
    return P


_PERM_NP = _make_deinterleave_matrix()


def _loss_kernel(inv_n, p_ref, t_ref, perm_ref, o_ref):
    """p_ref : (B, 63) pred, coordinate-major order (index c*21 + j)
       t_ref : (B, 63) target, joint-major order   (index 3*j  + c)
       perm_ref : (63, 63) de-interleave permutation (constant)
       o_ref : (1, 1) f32 output block."""
    # De-interleave target into pred's layout: one small MXU matmul.
    t = jnp.dot(t_ref[...], perm_ref[...], preferred_element_type=jnp.float32)
    d = p_ref[...] - t                                        # (B, 63) VPU
    sq = d * d                                                # (B, 63) VPU
    # Per-joint squared distance: sum the three contiguous coordinate blocks.
    d2 = (sq[:, 0:N_JOINTS]
          + sq[:, N_JOINTS:2 * N_JOINTS]
          + sq[:, 2 * N_JOINTS:3 * N_JOINTS])                 # (B, 21)
    dist = jnp.sqrt(d2)                                       # (B, 21) EUP
    # mean_j then mean_b == global mean over all B*21 joints.
    total = jnp.sum(jnp.sum(dist, axis=1, keepdims=True), axis=0, keepdims=True)
    o_ref[...] = total * inv_n                                # (1, 1)


def get_loss(pred, target):
    """pred (B, 3, 21), target (B, 63) or (B, 21, 3) -> scalar f32 loss."""
    B = pred.shape[0]
    # Free row-major reshapes only — no transpose fusions before the kernel.
    p = pred.reshape(B, N_FLAT).astype(jnp.float32)      # p[b, c*21+j]
    t = target.reshape(B, N_FLAT).astype(jnp.float32)    # t[b, 3*j + c]
    perm = jnp.asarray(_PERM_NP)                         # compile-time constant

    vmem = pl.BlockSpec(memory_space=pltpu.MemorySpace.VMEM)
    out = pl.pallas_call(
        functools.partial(_loss_kernel, 1.0 / (B * N_JOINTS)),
        out_shape=jax.ShapeDtypeStruct((1, 1), jnp.float32),
        in_specs=[vmem, vmem, vmem],
        out_specs=vmem,
    )(p, t, perm)
    return out[0, 0]


def _get_loss_ref(pred, target):
    """Pure-JAX reference matching the PyTorch loop structure."""
    B = pred.shape[0]
    joints = jnp.transpose(pred, (0, 2, 1))                    # (B, 21, 3)
    label = target.reshape(B, N_JOINTS, 3)                     # (B, 21, 3)
    dist = jnp.sqrt(jnp.sum((joints - label) ** 2, axis=-1))   # (B, 21)
    return jnp.mean(jnp.mean(dist, axis=1))                    # mean_j, mean_b


if __name__ == "__main__":
    B = 2
    k1, k2 = jax.random.split(jax.random.PRNGKey(0))
    pred = jax.random.normal(k1, (B, N_COORDS, N_JOINTS), jnp.float32)  # (2, 3, 21)
    target = jax.random.normal(k2, (B, N_JOINTS * N_COORDS), jnp.float32)  # (2, 63)

    loss = jax.jit(get_loss)(pred, target)
    loss = jax.block_until_ready(loss)

    ref = _get_loss_ref(pred, target)
    assert loss.shape == () and loss.dtype == jnp.float32
    assert jnp.allclose(loss, ref, rtol=1e-5, atol=1e-6), (loss, ref)
    print("KERNEL_OK")
</pallas_src>

<mosaic_0001>
module attributes {stable_mosaic.version = 11 : i64} {
  func.func @_loss_kernel(%arg0: memref<2x63xf32, #tpu.memory_space<vmem>>, %arg1: memref<2x63xf32, #tpu.memory_space<vmem>>, %arg2: memref<63x63xf32, #tpu.memory_space<vmem>>, %arg3: memref<1x1xf32, #tpu.memory_space<vmem>>) attributes {dimension_semantics = [], scalar_prefetch = 0 : i64, scratch_operands = 0 : i64, tpu.core_type = #tpu.core_type<tc>} {
    %c0 = arith.constant 0 : index
    %c0_0 = arith.constant 0 : index
    %0 = vector.load %arg1[%c0, %c0_0] : memref<2x63xf32, #tpu.memory_space<vmem>>, vector<2x63xf32>
    %c0_1 = arith.constant 0 : index
    %c0_2 = arith.constant 0 : index
    %1 = vector.load %arg2[%c0_1, %c0_2] : memref<63x63xf32, #tpu.memory_space<vmem>>, vector<63x63xf32>
    %cst = arith.constant dense<0.000000e+00> : vector<2x63xf32>
    %2 = tpu.matmul %0, %1, %cst {dimension_numbers = #tpu.dot_dimension_numbers<[1], [0], [0], [1], [0, 0, 1, 1], [], []>} : vector<2x63xf32>, vector<63x63xf32>, vector<2x63xf32> -> vector<2x63xf32>
    %c0_3 = arith.constant 0 : index
    %c0_4 = arith.constant 0 : index
    %3 = vector.load %arg0[%c0_3, %c0_4] : memref<2x63xf32, #tpu.memory_space<vmem>>, vector<2x63xf32>
    %4 = arith.subf %3, %2 : vector<2x63xf32>
    %5 = arith.mulf %4, %4 : vector<2x63xf32>
    %6 = vector.extract_strided_slice %5 {offsets = [0, 0], sizes = [2, 21], strides = [1, 1]} : vector<2x63xf32> to vector<2x21xf32>
    %7 = vector.extract_strided_slice %5 {offsets = [0, 21], sizes = [2, 21], strides = [1, 1]} : vector<2x63xf32> to vector<2x21xf32>
    %8 = arith.addf %6, %7 : vector<2x21xf32>
    %9 = vector.extract_strided_slice %5 {offsets = [0, 42], sizes = [2, 21], strides = [1, 1]} : vector<2x63xf32> to vector<2x21xf32>
    %10 = arith.addf %8, %9 : vector<2x21xf32>
    %11 = math.sqrt %10 : vector<2x21xf32>
    %cst_5 = arith.constant dense<0.000000e+00> : vector<2xf32>
    %12 = vector.multi_reduction <add>, %11, %cst_5 [1] : vector<2x21xf32> to vector<2xf32>
    %13 = vector.shape_cast %12 : vector<2xf32> to vector<2x1xf32>
    %cst_6 = arith.constant dense<0.000000e+00> : vector<1xf32>
    %14 = vector.multi_reduction <add>, %13, %cst_6 [0] : vector<2x1xf32> to vector<1xf32>
    %15 = vector.shape_cast %14 : vector<1xf32> to vector<1x1xf32>
    %cst_7 = arith.constant 0.0238095243 : f32
    %16 = vector.broadcast %cst_7 : f32 to vector<1x1xf32>
    %17 = arith.mulf %15, %16 : vector<1x1xf32>
    %c0_8 = arith.constant 0 : index
    %c0_9 = arith.constant 0 : index
    %18 = vector.load %arg3[%c0_8, %c0_9] : memref<1x1xf32, #tpu.memory_space<vmem>>, vector<1x1xf32>
    tpu.vector_store %arg3[%c0_8, %c0_9], %17 {strides = array<i32>} : memref<1x1xf32, #tpu.memory_space<vmem>>, vector<1x1xf32>,
    return
  }
}

</mosaic_0001>

<llo_original>
// kernel: get_loss.1
$region0: #{get_loss.1}
  #allocation0 [shape = 'u32[]', space=smem, size = 0x4, offset = 0x4, fixed_abs, tag = 'smem constant byte address 0x4 - core index']
  #allocation1 [shape = 'u32[144,128]{1,0:T(1,128)}', space=vmem, size = 0x12000, scoped, tag = 'internal scratch']
  %s0 = inlined_call_operand.vmem [shape: f32[2,63], index: 0, kind: input, shape index: {}]
  %s1 = inlined_call_operand.vmem [shape: f32[2,63], index: 1, kind: input, shape index: {}]
  %s2 = inlined_call_operand.hbm [shape: f32[63,63], index: 2, kind: input, shape index: {}]
  %s3 = inlined_call_operand.hbm [shape: f32[1,1], index: 3, kind: output, shape index: {}]
  %s4 = sld [smem:[#allocation0]]
  $region26: #{get_loss.1} parent=0
    _
  %s6 = ssub.s32 1, %s4
  %s7 = scalar_select 0, %s6, %s4
  $region1: #{get_loss.1} parent=0
    #allocation2 [shape = 'u8[32768]{0}', space=vmem, size = 0x8000, scoped, tag = 'input window, operand 2, single buffered']
    #allocation3 [shape = 's32[1]{0}', space=sflag, size = 0x4, scoped, tag = 'scoped memory for get_loss.1']
    #allocation4 [shape = 's32[1]{0}', space=sflag, size = 0x4, scoped, tag = 'scoped memory for get_loss.1']
    #allocation5 [shape = 'u8[512]{0}', space=vmem, size = 0x400, scoped, tag = 'output window, operand 0, single buffered']
    %8 = vsyncpa [#allocation3], 0
    %9 = vsyncpa [#allocation4], 0
    // Predicated region
    $region2: #{get_loss.1} parent=1 // pred_check
      _
    $region3: #{get_loss.1} parent=1 // pred_check_branch
      %11 = sbr.rel (0) target = $region5
    $region4: #{get_loss.1} parent=1 // pred_region
      _
    $region5: #{get_loss.1} parent=1 // pred_fallthru
      _
    // Predicated region
    $region6: #{get_loss.1} parent=1 // pred_check
      _
    $region7: #{get_loss.1} parent=1 // pred_check_branch
      %13 = sbr.rel (0) target = $region9
    $region8: #{get_loss.1} parent=1 // pred_region
      _
    $region9: #{get_loss.1} parent=1 // pred_fallthru
      _
    // Predicated region
    $region10: #{get_loss.1} parent=1 // pred_check
      _
    $region11: #{get_loss.1} parent=1 // pred_check_branch
      %15 = sbr.rel (0) target = $region13
    $region12: #{get_loss.1} parent=1 // pred_region
      %s17 = ssub.s32 1024, 1024
      %18 = vsyncadd [#allocation3], %s17
      %s19 = sshll.u32 [#allocation2], 4
      %s20 = int_to_ptr.vmem [resolvable:$true] %s19
      %25 = dma.hbm_to_vmem [thread:$0]  %s2, 1024, %s20, [#allocation3], 128, 128, 8
    $region13: #{get_loss.1} parent=1 // pred_fallthru
      _
    // Predicated region
    $region14: #{get_loss.1} parent=1 // pred_check
      _
    $region15: #{get_loss.1} parent=1 // pred_check_branch
      %27 = sbr.rel (0) target = $region17
    $region16: #{get_loss.1} parent=1 // pred_region
      %28 = dma.done [#allocation3], 1024
    $region17: #{get_loss.1} parent=1 // pred_fallthru
      _
    %v29 = vld [vmem:[%s1] sm:$0x3]
    %v30 = vld [vmem:[#allocation2] sm:$0xff]
    %v31 = vld [vmem:[#allocation2 + $0x8] sm:$0xff]
    %v32 = vld [vmem:[#allocation2 + $0x10] sm:$0xff]
    %v33 = vld [vmem:[#allocation2 + $0x18] sm:$0xff]
    %v34 = vld [vmem:[#allocation2 + $0x20] sm:$0xff]
    %v35 = vld [vmem:[#allocation2 + $0x28] sm:$0xff]
    %v36 = vld [vmem:[#allocation2 + $0x30] sm:$0xff]
    %v37 = vld [vmem:[#allocation2 + $0x38] sm:$0x7f]
    %vm38 = vcmask 515072
    %v40 = vsel %vm38, %v29, 0
    %vm42 = vcmask 1046528
    %v44 = vsel %vm42, %v37, 0
    %46 = vmatprep.subr.mxu0 0.0
    %47 = vmatpush1.msra.mxu0 %v30
    %48 = vmatprep.subr.mxu0 0.0
    %49 = vmatpush1.msra.mxu0 %v31
    %50 = vmatprep.subr.mxu0 0.0
    %51 = vmatpush1.msra.mxu0 %v32
    %52 = vmatprep.subr.mxu0 0.0
    %53 = vmatpush1.msra.mxu0 %v33
    %54 = vmatprep.subr.mxu0 0.0
    %55 = vmatpush1.msra.mxu0 %v34
    %56 = vmatprep.subr.mxu0 0.0
    %57 = vmatpush1.msra.mxu0 %v35
    %58 = vmatprep.subr.mxu0 0.0
    %59 = vmatpush1.msra.mxu0 %v36
    %60 = vmatprep.subr.mxu0 0.0
    %61 = vmatpush1.msra.mxu0 %v44
    %62 = vmatprep.subr.mxu0 0.0
    %63 = vmatpush1.msra.mxu0 0.0
    %64 = vmatprep.subr.mxu0 0.0
    %65 = vmatpush1.msra.mxu0 0.0
    %66 = vmatprep.subr.mxu0 0.0
    %67 = vmatpush1.msra.mxu0 0.0
    %68 = vmatprep.subr.mxu0 0.0
    %69 = vmatpush1.msra.mxu0 0.0
    %70 = vmatprep.subr.mxu0 0.0
    %71 = vmatpush1.msra.mxu0 0.0
    %72 = vmatprep.subr.mxu0 0.0
    %73 = vmatpush1.msra.mxu0 0.0
    %74 = vmatprep.subr.mxu0 0.0
    %75 = vmatpush1.msra.mxu0 0.0
    %76 = vmatprep.subr.mxu0 0.0
    %77 = vmatpush1.msra.mxu0 0.0
    %78 = vmatprep.subr.mxu0 0.0
    %79 = vmatpush1.msra.mxu0 0.0
    %80 = vmatprep.subr.mxu0 0.0
    %81 = vmatpush1.msra.mxu0 0.0
    %82 = vmatprep.subr.mxu0 0.0
    %83 = vmatpush1.msra.mxu0 0.0
    %84 = vmatprep.subr.mxu0 0.0
    %85 = vmatpush1.msra.mxu0 0.0
    %86 = vmatprep.subr.mxu0 0.0
    %87 = vmatpush1.msra.mxu0 0.0
    %88 = vmatprep.subr.mxu0 0.0
    %89 = vmatpush1.msra.mxu0 0.0
    %90 = vmatprep.subr.mxu0 0.0
    %91 = vmatpush1.msra.mxu0 0.0
    %92 = vmatprep.subr.mxu0 0.0
    %93 = vmatpush1.msra.mxu0 0.0
    %94 = vmatprep.subr.mxu0 0.0
    %95 = vmatpush1.msra.mxu0 0.0
    %96 = vmatprep.subr.mxu0 0.0
    %97 = vmatpush1.msra.mxu0 0.0
    %98 = vmatprep.subr.mxu0 0.0
    %99 = vmatpush1.msra.mxu0 0.0
    %100 = vmatprep.subr.mxu0 0.0
    %101 = vmatpush1.msra.mxu0 0.0
    %102 = vmatprep.subr.mxu0 0.0
    %103 = vmatpush1.msra.mxu0 0.0
    %104 = vmatprep.subr.mxu0 0.0
    %105 = vmatpush1.msra.mxu0 0.0
    %106 = vmatprep.subr.mxu0 0.0
    %107 = vmatpush1.msra.mxu0 0.0
    %108 = vmatprep.subr.mxu0 0.0
    %109 = vmatpush1.msra.mxu0 0.0
    %110 = vmatprep.mubr.f32.mxu0 0.0
    %111 = vmatmul.mubr.f32.gmra.mrb[0].mxu0 %v40
    %v112 = vpop.f32.mrb[0].mxu0
    %v113 = vadd.f32 0.0, %v112
    %v114 = vpop.f32.mrb[0].mxu0
    %115 = vdwg.mxu0
    %v116 = vld [vmem:[%s0] sm:$0x3]
    %v117 = vsub.f32 %v116, %v113
    %v118 = vmul.f32 %v117, %v117
    %120 = vrot.lane.b32.xlu0 %v118, 107
    %v121 = vpop.permute.xlu0 %120
    %v123 = vadd.f32 %v118, %v121
    %124 = vrot.lane.b32.xlu0 %v118, 86
    %v125 = vpop.permute.xlu0 %124
    %v127 = vadd.f32 %v123, %v125
    %v128 = vrsqrt.pop %v127
    %v129 = vmul.f32 %v127, %v128
    %vm130 = vcmp.eq.f32.partialorder %v127, inf
    %v131 = vsel %vm130, %v127, %v129
    %vm132 = vcmp.eq.f32.partialorder %v127, 0.0
    %v133 = vand.u32 %v127, 2147483648
    %v134 = vsel %vm132, %v133, %v131
    %vm135 = vcmask 164864
    %v136 = vsel %vm135, %v134, 0.0
    %137 = vadd.xlane.f32.xlu0 %v136
    %v138 = vpop.xlane.xlu0 %137
    %vm139 = vcmask 1041408
    %v140 = vsel %vm139, %v138, 0.0
    %v141 = vrot.slane %v140, 4
    %v142 = vadd.f32 %v140, %v141
    %v143 = vrot.slane %v142, 2
    %v144 = vadd.f32 %v142, %v143
    %v145 = vrot.slane %v144, 1
    %v146 = vadd.f32 %v144, %v145
    %v147 = vmul.f32 %v146, 0.023809524
    %vm148 = vcmask 0
    %149 = vst.msk [vmem:[#allocation5] sm:$0x1] %vm148, %v147
    // Predicated region
    $region18: #{get_loss.1} parent=1 // pred_check
      _
    $region19: #{get_loss.1} parent=1 // pred_check_branch
      %151 = sbr.rel (0) target = $region21
    $region20: #{get_loss.1} parent=1 // pred_region
      %s153 = ssub.s32 16, 16
      %154 = vsyncadd [#allocation4], %s153
      %s156 = sshll.u32 [#allocation5], 4
      %s157 = int_to_ptr.vmem [resolvable:$true] %s156
      %159 = dma.vmem_to_hbm [thread:$0]  %s157, 16, %s3, [#allocation4]
    $region21: #{get_loss.1} parent=1 // pred_fallthru
      _
    // Predicated region
    $region22: #{get_loss.1} parent=1 // pred_check
      _
    $region23: #{get_loss.1} parent=1 // pred_check_branch
      %161 = sbr.rel (0) target = $region25
    $region24: #{get_loss.1} parent=1 // pred_region
      %162 = dma.done [#allocation4], 16
    $region25: #{get_loss.1} parent=1 // pred_fallthru
      _
    %163 = vsyncpa [#allocation3], 1
    %164 = vsyncpa [#allocation4], 1

</llo_original>
